<compile_context>
chip_gen: v7x
topology: tpu7x:2x2x1
jax: 0.10.0
libtpu: 0.0.40
codegen_flags: <defaults>
</compile_context>

<pallas_src>
import functools

import jax
import jax.numpy as jnp
from jax.experimental import pallas as pl
from jax.experimental.pallas import tpu as pltpu


# --------------------------------------------------------------------------
# Kernels
# --------------------------------------------------------------------------
def ppo_fused_kernel(
    x_ref,
    w1_ref, b1_ref,        # fused layer 1 (actor|critic share x): (S, 2H), (1, 2H)
    w2_ref, b2_ref,        # block-diag layer 2: (2H, 2H), (1, 2H)
    w3_ref, b3_ref,        # block-diag layer 3: (2H, A+1), (1, A+1)
    out_ref,               # (TILE_B, A+1) = [probs | value]
):
    """v6e / v7x path: 256-wide block-diagonal matmuls, bf16 elementwise."""
    A = out_ref.shape[-1] - 1

    x = x_ref[...].astype(jnp.bfloat16)

    # layer 1: f32 accumulate, single bf16 downcast fused with the ReLU.
    h = jnp.dot(x, w1_ref[...], preferred_element_type=jnp.float32) + b1_ref[...]
    h = jnp.maximum(h.astype(jnp.bfloat16), 0.0)

    # layer 2: block-diag(actor, critic) -> one (TILE_B, 2H) x (2H, 2H) matmul.
    h = jnp.dot(h, w2_ref[...], preferred_element_type=jnp.float32) + b2_ref[...]
    h = jnp.maximum(h.astype(jnp.bfloat16), 0.0)

    # layer 3: block-diag -> [logits | value] in one (TILE_B, A+1) tensor.
    z = jnp.dot(h, w3_ref[...], preferred_element_type=jnp.float32) + b3_ref[...]

    # Softmax over the first A lanes only; the value lane passes through.
    lane = jax.lax.broadcasted_iota(jnp.int32, z.shape, 1)
    is_logit = lane < A
    m = jnp.max(jnp.where(is_logit, z, -jnp.inf), axis=-1, keepdims=True)
    e = jnp.where(is_logit, jnp.exp(z - m), 0.0)
    denom = jnp.sum(e, axis=-1, keepdims=True)
    out_ref[...] = jnp.where(is_logit, e / denom, z)


def ppo_split_kernel(
    x_ref,
    w1_ref, b1_ref,                      # fused layer 1: (S, 2H), (1, 2H)
    aw2_ref, ab2_ref, aw3_ref, ab3_ref,  # actor layers 2, 3
    cw2_ref, cb2_ref, cw3_ref, cb3_ref,  # critic layers 2, 3
    out_ref,                             # (TILE_B, A+1) = [probs | value]
):
    """v5e-safe path: separate 128-wide matmuls, f32 elementwise (no bf16 VALU)."""
    H = aw2_ref.shape[0]

    x = x_ref[...].astype(jnp.bfloat16)

    # Fused layer 1 (actor + critic share x); keep activations in f32.
    hc = jnp.dot(x, w1_ref[...], preferred_element_type=jnp.float32) + b1_ref[...]
    hc = jnp.maximum(hc, 0.0)
    h = hc[:, :H]
    c = hc[:, H:]

    # Actor: Linear -> ReLU -> Linear -> Softmax.
    h = jnp.dot(h.astype(jnp.bfloat16), aw2_ref[...],
                preferred_element_type=jnp.float32) + ab2_ref[...]
    h = jnp.maximum(h, 0.0)
    logits = jnp.dot(h.astype(jnp.bfloat16), aw3_ref[...],
                     preferred_element_type=jnp.float32) + ab3_ref[...]
    m = jnp.max(logits, axis=-1, keepdims=True)
    e = jnp.exp(logits - m)
    probs = e / jnp.sum(e, axis=-1, keepdims=True)

    # Critic: Linear -> ReLU -> Linear (scalar value).
    c = jnp.dot(c.astype(jnp.bfloat16), cw2_ref[...],
                preferred_element_type=jnp.float32) + cb2_ref[...]
    c = jnp.maximum(c, 0.0)
    value = jnp.dot(c.astype(jnp.bfloat16), cw3_ref[...],
                    preferred_element_type=jnp.float32) + cb3_ref[...]

    out_ref[...] = jnp.concatenate([probs, value], axis=-1)


# --------------------------------------------------------------------------
# Parameter preparation (one-time layout plumbing, hoisted out of the hot path)
# --------------------------------------------------------------------------
def prepare_params(params, *, fuse_blockdiag):
    """Concat / block-diag / bf16-cast the weights once, outside the forward."""
    H = params["aw2"].shape[0]
    A = params["aw3"].shape[1]
    f32 = jnp.float32

    w1 = jnp.concatenate([params["aw1"], params["cw1"]], axis=1).astype(jnp.bfloat16)
    b1 = jnp.concatenate([params["ab1"], params["cb1"]], axis=1)  # f32

    if fuse_blockdiag:
        zero_hh = jnp.zeros((H, H), f32)
        w2 = jnp.concatenate(
            [jnp.concatenate([params["aw2"], zero_hh], axis=1),
             jnp.concatenate([zero_hh, params["cw2"]], axis=1)],
            axis=0).astype(jnp.bfloat16)                          # (2H, 2H)
        b2 = jnp.concatenate([params["ab2"], params["cb2"]], axis=1)
        w3 = jnp.concatenate(
            [jnp.concatenate([params["aw3"], jnp.zeros((H, 1), f32)], axis=1),
             jnp.concatenate([jnp.zeros((H, A), f32), params["cw3"]], axis=1)],
            axis=0).astype(jnp.bfloat16)                          # (2H, A+1)
        b3 = jnp.concatenate([params["ab3"], params["cb3"]], axis=1)
        return {"w1": w1, "b1": b1, "w2": w2, "b2": b2, "w3": w3, "b3": b3}

    return {
        "w1": w1, "b1": b1,
        "aw2": params["aw2"].astype(jnp.bfloat16), "ab2": params["ab2"],
        "aw3": params["aw3"].astype(jnp.bfloat16), "ab3": params["ab3"],
        "cw2": params["cw2"].astype(jnp.bfloat16), "cb2": params["cb2"],
        "cw3": params["cw3"].astype(jnp.bfloat16), "cb3": params["cb3"],
    }


def mxu_is_256():
    """True on chips with a 256x256 MXU (v6e / v7x); False elsewhere (safe default)."""
    try:
        kind = jax.devices()[0].device_kind.lower()
    except Exception:
        return False
    return ("v6" in kind) or ("v7" in kind) or ("7x" in kind)


# --------------------------------------------------------------------------
# Forward wrapper
# --------------------------------------------------------------------------
def _round_up(x, m):
    return ((x + m - 1) // m) * m


def _choose_tile_b(B, tile_b):
    tile = min(tile_b, B)
    # Prefer >= 2 grid steps when the batch is big enough: on megacore parts
    # (v7x) dimension_semantics=("parallel",) then shards the batch across
    # both TensorCores; elsewhere the extra step costs ~0.35 us (negligible).
    if B >= 16 and tile >= B:
        tile = max(8, _round_up((B + 1) // 2, 8))
    if tile != B:
        tile = _round_up(tile, 8)  # (8, 128) block rule: multiple of 8 or full dim
    return tile


@functools.partial(jax.jit, static_argnames=("fuse_blockdiag", "tile_b"))
def ppo_agent_forward(state, prepared, *, fuse_blockdiag, tile_b=1024):
    """state: (B, state_dim) float32. prepared: output of prepare_params."""
    B, S = state.shape
    TILE_B = _choose_tile_b(B, tile_b)
    num_steps = pl.cdiv(B, TILE_B)

    # State is the only streamed operand -> deeper buffering when multi-step.
    state_spec = pl.BlockSpec(
        (TILE_B, S), lambda i: (i, 0),
        pipeline_mode=pl.Buffered(3) if num_steps > 1 else None)

    def resident(arr):
        # Full-array block with a constant block index -> stays VMEM-resident.
        return pl.BlockSpec(arr.shape, lambda i: (0, 0))

    if fuse_blockdiag:
        operands = (state, prepared["w1"], prepared["b1"],
                    prepared["w2"], prepared["b2"],
                    prepared["w3"], prepared["b3"])
        kernel = ppo_fused_kernel
        A = prepared["w3"].shape[1] - 1
        flops = 2 * B * (S * prepared["w1"].shape[1]
                         + prepared["w2"].shape[0] * prepared["w2"].shape[1]
                         + prepared["w3"].shape[0] * prepared["w3"].shape[1])
    else:
        operands = (state, prepared["w1"], prepared["b1"],
                    prepared["aw2"], prepared["ab2"],
                    prepared["aw3"], prepared["ab3"],
                    prepared["cw2"], prepared["cb2"],
                    prepared["cw3"], prepared["cb3"])
        kernel = ppo_split_kernel
        H = prepared["aw2"].shape[0]
        A = prepared["aw3"].shape[1]
        flops = 2 * B * (S * 2 * H + 2 * H * H + H * (A + 1))

    in_specs = [state_spec] + [resident(a) for a in operands[1:]]
    # Narrow (A+1)-lane output kept on purpose: padding to 128 lanes would
    # multiply output HBM writeback ~14x for a negligible vst.msk saving.
    out_specs = pl.BlockSpec((TILE_B, A + 1), lambda i: (i, 0))

    weight_bytes = sum(int(a.size) * a.dtype.itemsize for a in operands[1:])
    cost = pl.CostEstimate(
        flops=flops,
        transcendentals=B * A,
        bytes_accessed=B * S * 4 + weight_bytes + B * (A + 1) * 4,
    )

    out = pl.pallas_call(
        kernel,
        grid=(num_steps,),
        in_specs=in_specs,
        out_specs=out_specs,
        out_shape=jax.ShapeDtypeStruct((B, A + 1), jnp.float32),
        compiler_params=pltpu.CompilerParams(
            dimension_semantics=("parallel",),  # batch axis shards across TCs
        ),
        cost_estimate=cost,
    )(*operands)

    return out[:, :A], out[:, A:]


# --------------------------------------------------------------------------
# Test harness
# --------------------------------------------------------------------------
def init_params(key, state_dim, action_dim, hidden_dim=128):
    """Deterministic synthetic parameters (PyTorch-style uniform fan-in init)."""
    def linear(key, fan_in, fan_out):
        k_w, k_b = jax.random.split(key)
        bound = 1.0 / jnp.sqrt(fan_in)
        w = jax.random.uniform(k_w, (fan_in, fan_out), jnp.float32, -bound, bound)
        b = jax.random.uniform(k_b, (1, fan_out), jnp.float32, -bound, bound)
        return w, b

    keys = jax.random.split(key, 6)
    p = {}
    p["aw1"], p["ab1"] = linear(keys[0], state_dim, hidden_dim)
    p["aw2"], p["ab2"] = linear(keys[1], hidden_dim, hidden_dim)
    p["aw3"], p["ab3"] = linear(keys[2], hidden_dim, action_dim)
    p["cw1"], p["cb1"] = linear(keys[3], state_dim, hidden_dim)
    p["cw2"], p["cb2"] = linear(keys[4], hidden_dim, hidden_dim)
    p["cw3"], p["cb3"] = linear(keys[5], hidden_dim, 1)
    return p


def reference_forward(state, params):
    """Plain-JAX f32 reference mirroring the PyTorch module semantics."""
    h = jnp.maximum(state @ params["aw1"] + params["ab1"], 0.0)
    h = jnp.maximum(h @ params["aw2"] + params["ab2"], 0.0)
    logits = h @ params["aw3"] + params["ab3"]
    probs = jax.nn.softmax(logits, axis=-1)
    c = jnp.maximum(state @ params["cw1"] + params["cb1"], 0.0)
    c = jnp.maximum(c @ params["cw2"] + params["cb2"], 0.0)
    value = c @ params["cw3"] + params["cb3"]
    return probs, value


if __name__ == "__main__":
    key = jax.random.PRNGKey(0)
    k_params, k_state, k_state2 = jax.random.split(key, 3)

    batch = 8
    state_dim = 16
    action_dim = 8
    hidden_dim = 32

    params = init_params(k_params, state_dim, action_dim, hidden_dim)
    state = jax.random.normal(k_state, (batch, state_dim), jnp.float32)
    ref_probs, ref_value = reference_forward(state, params)

    fuse_default = mxu_is_256()

    # Exercise both kernel variants (block-diag fused and split) regardless of
    # the chip present; both are functionally correct everywhere.
    for fuse in (fuse_default, not fuse_default):
        prepared = prepare_params(params, fuse_blockdiag=fuse)
        probs, value = ppo_agent_forward(state, prepared, fuse_blockdiag=fuse)
        probs = jax.block_until_ready(probs)
        value = jax.block_until_ready(value)
        assert probs.shape == (batch, action_dim)
        assert value.shape == (batch, 1)
        # bf16 matmul operands -> loosened tolerances vs the f32 reference.
        assert jnp.allclose(probs, ref_probs, atol=3e-2, rtol=5e-2)
        assert jnp.allclose(value, ref_value, atol=3e-2, rtol=5e-2)
        assert jnp.allclose(jnp.sum(probs, axis=-1), 1.0, atol=1e-3)

    # Multi-step grid: exercises the >=2-grid-step tile cap, Buffered(3) on the
    # state stream, "parallel" batch sharding, and tail-tile padding (72 rows
    # -> 2 tiles of 40, last tile partially padded and discarded).
    batch2 = 72
    state2 = jax.random.normal(k_state2, (batch2, state_dim), jnp.float32)
    ref_probs2, ref_value2 = reference_forward(state2, params)
    prepared = prepare_params(params, fuse_blockdiag=fuse_default)
    probs2, value2 = ppo_agent_forward(state2, prepared, fuse_blockdiag=fuse_default)
    probs2 = jax.block_until_ready(probs2)
    value2 = jax.block_until_ready(value2)
    assert probs2.shape == (batch2, action_dim)
    assert value2.shape == (batch2, 1)
    assert jnp.allclose(probs2, ref_probs2, atol=3e-2, rtol=5e-2)
    assert jnp.allclose(value2, ref_value2, atol=3e-2, rtol=5e-2)

    print("KERNEL_OK")
</pallas_src>

<mosaic_0001>
module attributes {stable_mosaic.version = 11 : i64} {
  func.func @ppo_split_kernel(%arg0: i32, %arg1: memref<8x16xf32, #tpu.memory_space<vmem>>, %arg2: memref<16x64xbf16, #tpu.memory_space<vmem>>, %arg3: memref<1x64xf32, #tpu.memory_space<vmem>>, %arg4: memref<32x32xbf16, #tpu.memory_space<vmem>>, %arg5: memref<1x32xf32, #tpu.memory_space<vmem>>, %arg6: memref<32x8xbf16, #tpu.memory_space<vmem>>, %arg7: memref<1x8xf32, #tpu.memory_space<vmem>>, %arg8: memref<32x32xbf16, #tpu.memory_space<vmem>>, %arg9: memref<1x32xf32, #tpu.memory_space<vmem>>, %arg10: memref<32x1xbf16, #tpu.memory_space<vmem>>, %arg11: memref<1x1xf32, #tpu.memory_space<vmem>>, %arg12: memref<8x9xf32, #tpu.memory_space<vmem>>) attributes {dimension_semantics = [#tpu.dimension_semantics<parallel>], iteration_bounds = array<i64: 1>, scalar_prefetch = 0 : i64, scratch_operands = 0 : i64, tpu.core_type = #tpu.core_type<tc>, window_params = [{transform_indices = @transform_0, window_bounds = array<i64: 8, 16>}, {pipeline_mode = #tpu.pipeline_mode<synchronous>, transform_indices = @transform_1, window_bounds = array<i64: 16, 64>}, {pipeline_mode = #tpu.pipeline_mode<synchronous>, transform_indices = @transform_2, window_bounds = array<i64: 1, 64>}, {pipeline_mode = #tpu.pipeline_mode<synchronous>, transform_indices = @transform_3, window_bounds = array<i64: 32, 32>}, {pipeline_mode = #tpu.pipeline_mode<synchronous>, transform_indices = @transform_4, window_bounds = array<i64: 1, 32>}, {pipeline_mode = #tpu.pipeline_mode<synchronous>, transform_indices = @transform_5, window_bounds = array<i64: 32, 8>}, {pipeline_mode = #tpu.pipeline_mode<synchronous>, transform_indices = @transform_6, window_bounds = array<i64: 1, 8>}, {pipeline_mode = #tpu.pipeline_mode<synchronous>, transform_indices = @transform_7, window_bounds = array<i64: 32, 32>}, {pipeline_mode = #tpu.pipeline_mode<synchronous>, transform_indices = @transform_8, window_bounds = array<i64: 1, 32>}, {pipeline_mode = #tpu.pipeline_mode<synchronous>, transform_indices = @transform_9, window_bounds = array<i64: 32, 1>}, {pipeline_mode = #tpu.pipeline_mode<synchronous>, transform_indices = @transform_10, window_bounds = array<i64: 1, 1>}, {transform_indices = @transform_11, window_bounds = array<i64: 8, 9>}]} {
    %c0 = arith.constant 0 : index
    %c0_0 = arith.constant 0 : index
    %0 = vector.load %arg1[%c0, %c0_0] : memref<8x16xf32, #tpu.memory_space<vmem>>, vector<8x16xf32>
    %1 = arith.truncf %0 : vector<8x16xf32> to vector<8x16xbf16>
    %c0_1 = arith.constant 0 : index
    %c0_2 = arith.constant 0 : index
    %2 = vector.load %arg2[%c0_1, %c0_2] : memref<16x64xbf16, #tpu.memory_space<vmem>>, vector<16x64xbf16>
    %cst = arith.constant dense<0.000000e+00> : vector<8x64xf32>
    %3 = tpu.matmul %1, %2, %cst {dimension_numbers = #tpu.dot_dimension_numbers<[1], [0], [0], [1], [0, 0, 1, 1], [], []>} : vector<8x16xbf16>, vector<16x64xbf16>, vector<8x64xf32> -> vector<8x64xf32>
    %c0_3 = arith.constant 0 : index
    %c0_4 = arith.constant 0 : index
    %4 = vector.load %arg3[%c0_3, %c0_4] : memref<1x64xf32, #tpu.memory_space<vmem>>, vector<1x64xf32>
    %5 = vector.broadcast %4 : vector<1x64xf32> to vector<8x64xf32>
    %6 = arith.addf %3, %5 : vector<8x64xf32>
    %cst_5 = arith.constant 0.000000e+00 : f32
    %7 = vector.broadcast %cst_5 : f32 to vector<8x64xf32>
    %8 = arith.maximumf %6, %7 : vector<8x64xf32>
    %9 = vector.extract_strided_slice %8 {offsets = [0, 0], sizes = [8, 32], strides = [1, 1]} : vector<8x64xf32> to vector<8x32xf32>
    %10 = vector.extract_strided_slice %8 {offsets = [0, 32], sizes = [8, 32], strides = [1, 1]} : vector<8x64xf32> to vector<8x32xf32>
    %11 = arith.truncf %9 : vector<8x32xf32> to vector<8x32xbf16>
    %c0_6 = arith.constant 0 : index
    %c0_7 = arith.constant 0 : index
    %12 = vector.load %arg4[%c0_6, %c0_7] : memref<32x32xbf16, #tpu.memory_space<vmem>>, vector<32x32xbf16>
    %cst_8 = arith.constant dense<0.000000e+00> : vector<8x32xf32>
    %13 = tpu.matmul %11, %12, %cst_8 {dimension_numbers = #tpu.dot_dimension_numbers<[1], [0], [0], [1], [0, 0, 1, 1], [], []>} : vector<8x32xbf16>, vector<32x32xbf16>, vector<8x32xf32> -> vector<8x32xf32>
    %c0_9 = arith.constant 0 : index
    %c0_10 = arith.constant 0 : index
    %14 = vector.load %arg5[%c0_9, %c0_10] : memref<1x32xf32, #tpu.memory_space<vmem>>, vector<1x32xf32>
    %15 = vector.broadcast %14 : vector<1x32xf32> to vector<8x32xf32>
    %16 = arith.addf %13, %15 : vector<8x32xf32>
    %cst_11 = arith.constant 0.000000e+00 : f32
    %17 = vector.broadcast %cst_11 : f32 to vector<8x32xf32>
    %18 = arith.maximumf %16, %17 : vector<8x32xf32>
    %19 = arith.truncf %18 : vector<8x32xf32> to vector<8x32xbf16>
    %c0_12 = arith.constant 0 : index
    %c0_13 = arith.constant 0 : index
    %20 = vector.load %arg6[%c0_12, %c0_13] : memref<32x8xbf16, #tpu.memory_space<vmem>>, vector<32x8xbf16>
    %cst_14 = arith.constant dense<0.000000e+00> : vector<8x8xf32>
    %21 = tpu.matmul %19, %20, %cst_14 {dimension_numbers = #tpu.dot_dimension_numbers<[1], [0], [0], [1], [0, 0, 1, 1], [], []>} : vector<8x32xbf16>, vector<32x8xbf16>, vector<8x8xf32> -> vector<8x8xf32>
    %c0_15 = arith.constant 0 : index
    %c0_16 = arith.constant 0 : index
    %22 = vector.load %arg7[%c0_15, %c0_16] : memref<1x8xf32, #tpu.memory_space<vmem>>, vector<1x8xf32>
    %23 = vector.broadcast %22 : vector<1x8xf32> to vector<8x8xf32>
    %24 = arith.addf %21, %23 : vector<8x8xf32>
    %cst_17 = arith.constant dense<0xFF800000> : vector<8xf32>
    %25 = vector.multi_reduction <maximumf>, %24, %cst_17 [1] : vector<8x8xf32> to vector<8xf32>
    %26 = vector.shape_cast %25 : vector<8xf32> to vector<8x1xf32>
    %27 = vector.broadcast %26 : vector<8x1xf32> to vector<8x8xf32>
    %28 = arith.subf %24, %27 : vector<8x8xf32>
    %29 = math.exp %28 : vector<8x8xf32>
    %cst_18 = arith.constant dense<0.000000e+00> : vector<8xf32>
    %30 = vector.multi_reduction <add>, %29, %cst_18 [1] : vector<8x8xf32> to vector<8xf32>
    %31 = vector.shape_cast %30 : vector<8xf32> to vector<8x1xf32>
    %32 = vector.broadcast %31 : vector<8x1xf32> to vector<8x8xf32>
    %33 = arith.divf %29, %32 : vector<8x8xf32>
    %34 = arith.truncf %10 : vector<8x32xf32> to vector<8x32xbf16>
    %c0_19 = arith.constant 0 : index
    %c0_20 = arith.constant 0 : index
    %35 = vector.load %arg8[%c0_19, %c0_20] : memref<32x32xbf16, #tpu.memory_space<vmem>>, vector<32x32xbf16>
    %cst_21 = arith.constant dense<0.000000e+00> : vector<8x32xf32>
    %36 = tpu.matmul %34, %35, %cst_21 {dimension_numbers = #tpu.dot_dimension_numbers<[1], [0], [0], [1], [0, 0, 1, 1], [], []>} : vector<8x32xbf16>, vector<32x32xbf16>, vector<8x32xf32> -> vector<8x32xf32>
    %c0_22 = arith.constant 0 : index
    %c0_23 = arith.constant 0 : index
    %37 = vector.load %arg9[%c0_22, %c0_23] : memref<1x32xf32, #tpu.memory_space<vmem>>, vector<1x32xf32>
    %38 = vector.broadcast %37 : vector<1x32xf32> to vector<8x32xf32>
    %39 = arith.addf %36, %38 : vector<8x32xf32>
    %cst_24 = arith.constant 0.000000e+00 : f32
    %40 = vector.broadcast %cst_24 : f32 to vector<8x32xf32>
    %41 = arith.maximumf %39, %40 : vector<8x32xf32>
    %42 = arith.truncf %41 : vector<8x32xf32> to vector<8x32xbf16>
    %c0_25 = arith.constant 0 : index
    %c0_26 = arith.constant 0 : index
    %43 = vector.load %arg10[%c0_25, %c0_26] : memref<32x1xbf16, #tpu.memory_space<vmem>>, vector<32x1xbf16>
    %cst_27 = arith.constant dense<0.000000e+00> : vector<8x1xf32>
    %44 = tpu.matmul %42, %43, %cst_27 {dimension_numbers = #tpu.dot_dimension_numbers<[1], [0], [0], [1], [0, 0, 1, 1], [], []>} : vector<8x32xbf16>, vector<32x1xbf16>, vector<8x1xf32> -> vector<8x1xf32>
    %c0_28 = arith.constant 0 : index
    %c0_29 = arith.constant 0 : index
    %45 = vector.load %arg11[%c0_28, %c0_29] : memref<1x1xf32, #tpu.memory_space<vmem>>, vector<1x1xf32>
    %46 = vector.broadcast %45 : vector<1x1xf32> to vector<8x1xf32>
    %47 = arith.addf %44, %46 : vector<8x1xf32>
    %48 = tpu.concatenate %33, %47 in 1 : vector<8x8xf32>, vector<8x1xf32> -> vector<8x9xf32>
    %c0_30 = arith.constant 0 : index
    %c0_31 = arith.constant 0 : index
    %49 = vector.load %arg12[%c0_30, %c0_31] : memref<8x9xf32, #tpu.memory_space<vmem>>, vector<8x9xf32>
    tpu.vector_store %arg12[%c0_30, %c0_31], %48 {strides = array<i32>} : memref<8x9xf32, #tpu.memory_space<vmem>>, vector<8x9xf32>,
    return
  }
  func.func @transform_0(%arg0: i32) -> (i32, i32) {
    %c0_i32 = arith.constant 0 : i32
    %c0_i32_0 = arith.constant 0 : i32
    return %arg0, %c0_i32 : i32, i32
  }
  func.func @transform_1(%arg0: i32) -> (i32, i32) {
    %c0_i32 = arith.constant 0 : i32
    %c0_i32_0 = arith.constant 0 : i32
    %c0_i32_1 = arith.constant 0 : i32
    return %c0_i32, %c0_i32_0 : i32, i32
  }
  func.func @transform_2(%arg0: i32) -> (i32, i32) {
    %c0_i32 = arith.constant 0 : i32
    %c0_i32_0 = arith.constant 0 : i32
    %c0_i32_1 = arith.constant 0 : i32
    return %c0_i32, %c0_i32_0 : i32, i32
  }
  func.func @transform_3(%arg0: i32) -> (i32, i32) {
    %c0_i32 = arith.constant 0 : i32
    %c0_i32_0 = arith.constant 0 : i32
    %c0_i32_1 = arith.constant 0 : i32
    return %c0_i32, %c0_i32_0 : i32, i32
  }
  func.func @transform_4(%arg0: i32) -> (i32, i32) {
    %c0_i32 = arith.constant 0 : i32
    %c0_i32_0 = arith.constant 0 : i32
    %c0_i32_1 = arith.constant 0 : i32
    return %c0_i32, %c0_i32_0 : i32, i32
  }
  func.func @transform_5(%arg0: i32) -> (i32, i32) {
    %c0_i32 = arith.constant 0 : i32
    %c0_i32_0 = arith.constant 0 : i32
    %c0_i32_1 = arith.constant 0 : i32
    return %c0_i32, %c0_i32_0 : i32, i32
  }
  func.func @transform_6(%arg0: i32) -> (i32, i32) {
    %c0_i32 = arith.constant 0 : i32
    %c0_i32_0 = arith.constant 0 : i32
    %c0_i32_1 = arith.constant 0 : i32
    return %c0_i32, %c0_i32_0 : i32, i32
  }
  func.func @transform_7(%arg0: i32) -> (i32, i32) {
    %c0_i32 = arith.constant 0 : i32
    %c0_i32_0 = arith.constant 0 : i32
    %c0_i32_1 = arith.constant 0 : i32
    return %c0_i32, %c0_i32_0 : i32, i32
  }
  func.func @transform_8(%arg0: i32) -> (i32, i32) {
    %c0_i32 = arith.constant 0 : i32
    %c0_i32_0 = arith.constant 0 : i32
    %c0_i32_1 = arith.constant 0 : i32
    return %c0_i32, %c0_i32_0 : i32, i32
  }
  func.func @transform_9(%arg0: i32) -> (i32, i32) {
    %c0_i32 = arith.constant 0 : i32
    %c0_i32_0 = arith.constant 0 : i32
    %c0_i32_1 = arith.constant 0 : i32
    return %c0_i32, %c0_i32_0 : i32, i32
  }
  func.func @transform_10(%arg0: i32) -> (i32, i32) {
    %c0_i32 = arith.constant 0 : i32
    %c0_i32_0 = arith.constant 0 : i32
    %c0_i32_1 = arith.constant 0 : i32
    return %c0_i32, %c0_i32_0 : i32, i32
  }
  func.func @transform_11(%arg0: i32) -> (i32, i32) {
    %c0_i32 = arith.constant 0 : i32
    %c0_i32_0 = arith.constant 0 : i32
    return %arg0, %c0_i32 : i32, i32
  }
}

</mosaic_0001>

<llo_original>
// kernel: ppo_agent_forward.1
$region0: #{ppo_agent_forward.1}
  #allocation0 [shape = 'u32[]', space=smem, size = 0x4, offset = 0x4, fixed_abs, tag = 'smem constant byte address 0x4 - core index']
  #allocation1 [shape = 'u32[144,128]{1,0:T(1,128)}', space=vmem, size = 0x12000, scoped, tag = 'internal scratch']
  #allocation2 [shape = 'f32[1,1]{1,0:T(1,128)S(1)}', space=vmem, size = 0x200, scoped, tag = 'scoped memory for ppo_agent_forward.1']
  %s0 = inlined_call_operand.vmem [shape: f32[8,16], index: 0, kind: input, shape index: {}]
  %s1 = inlined_call_operand.vmem [shape: bf16[16,64], index: 1, kind: input, shape index: {}]
  %s2 = inlined_call_operand.vmem [shape: f32[1,64], index: 2, kind: input, shape index: {}]
  %s3 = inlined_call_operand.vmem [shape: bf16[32,32], index: 3, kind: input, shape index: {}]
  %s4 = inlined_call_operand.hbm [shape: f32[1,32], index: 4, kind: input, shape index: {}]
  %s5 = inlined_call_operand.vmem [shape: bf16[32,8], index: 5, kind: input, shape index: {}]
  %s6 = inlined_call_operand.hbm [shape: f32[1,8], index: 6, kind: input, shape index: {}]
  %s7 = inlined_call_operand.vmem [shape: bf16[32,32], index: 7, kind: input, shape index: {}]
  %s8 = inlined_call_operand.vmem [shape: f32[1,32], index: 8, kind: input, shape index: {}]
  %s9 = inlined_call_operand.vmem [shape: bf16[32,1], index: 9, kind: input, shape index: {}]
  %s10 = inlined_call_operand.<no memory space> [shape: f32[1,1], index: 10, kind: input, shape index: {}]
  %s11 = inlined_call_operand.vmem [shape: f32[8,9], index: 11, kind: output, shape index: {}]
  %s12 = sld [smem:[#allocation0]]
  $region62: #{ppo_agent_forward.1} parent=0
    _
  %s14 = ssub.s32 1, %s12
  %s15 = scalar_select 0, %s14, %s12
  %v16 = vstv %s10
  %17 = vst [vmem:[#allocation2] sm:$0x1] %v16
  $region1: #{ppo_agent_forward.1} parent=0
    #allocation3 [shape = 'u8[512]{0}', space=vmem, size = 0x400, scoped, tag = 'input window, operand 4, single buffered']
    #allocation4 [shape = 's32[1]{0}', space=sflag, size = 0x4, scoped, tag = 'scoped memory for ppo_agent_forward.1']
    #allocation5 [shape = 'u8[512]{0}', space=vmem, size = 0x400, scoped, tag = 'input window, operand 6, single buffered']
    #allocation6 [shape = 's32[1]{0}', space=sflag, size = 0x4, scoped, tag = 'scoped memory for ppo_agent_forward.1']
    %18 = vsyncpa [#allocation4], 0
    %19 = vsyncpa [#allocation6], 0
    // Predicated region
    $region2: #{ppo_agent_forward.1} parent=1 // pred_check
      _
    $region3: #{ppo_agent_forward.1} parent=1 // pred_check_branch
      %21 = sbr.rel (0) target = $region5
    $region4: #{ppo_agent_forward.1} parent=1 // pred_region
      _
    $region5: #{ppo_agent_forward.1} parent=1 // pred_fallthru
      _
    // Predicated region
    $region6: #{ppo_agent_forward.1} parent=1 // pred_check
      _
    $region7: #{ppo_agent_forward.1} parent=1 // pred_check_branch
      %23 = sbr.rel (0) target = $region9
    $region8: #{ppo_agent_forward.1} parent=1 // pred_region
      _
    $region9: #{ppo_agent_forward.1} parent=1 // pred_fallthru
      _
    // Predicated region
    $region10: #{ppo_agent_forward.1} parent=1 // pred_check
      _
    $region11: #{ppo_agent_forward.1} parent=1 // pred_check_branch
      %25 = sbr.rel (0) target = $region13
    $region12: #{ppo_agent_forward.1} parent=1 // pred_region
      _
    $region13: #{ppo_agent_forward.1} parent=1 // pred_fallthru
      _
    // Predicated region
    $region14: #{ppo_agent_forward.1} parent=1 // pred_check
      _
    $region15: #{ppo_agent_forward.1} parent=1 // pred_check_branch
      %27 = sbr.rel (0) target = $region17
    $region16: #{ppo_agent_forward.1} parent=1 // pred_region
      _
    $region17: #{ppo_agent_forward.1} parent=1 // pred_fallthru
      _
    // Predicated region
    $region18: #{ppo_agent_forward.1} parent=1 // pred_check
      _
    $region19: #{ppo_agent_forward.1} parent=1 // pred_check_branch
      %29 = sbr.rel (0) target = $region21
    $region20: #{ppo_agent_forward.1} parent=1 // pred_region
      %s31 = ssub.s32 16, 16
      %32 = vsyncadd [#allocation4], %s31
      %s34 = sshll.u32 [#allocation3], 4
      %s35 = int_to_ptr.vmem [resolvable:$true] %s34
      %37 = dma.hbm_to_vmem [thread:$0]  %s4, 16, %s35, [#allocation4]
    $region21: #{ppo_agent_forward.1} parent=1 // pred_fallthru
      _
    // Predicated region
    $region22: #{ppo_agent_forward.1} parent=1 // pred_check
      _
    $region23: #{ppo_agent_forward.1} parent=1 // pred_check_branch
      %39 = sbr.rel (0) target = $region25
    $region24: #{ppo_agent_forward.1} parent=1 // pred_region
      _
    $region25: #{ppo_agent_forward.1} parent=1 // pred_fallthru
      _
    // Predicated region
    $region26: #{ppo_agent_forward.1} parent=1 // pred_check
      _
    $region27: #{ppo_agent_forward.1} parent=1 // pred_check_branch
      %41 = sbr.rel (0) target = $region29
    $region28: #{ppo_agent_forward.1} parent=1 // pred_region
      %s43 = ssub.s32 16, 16
      %44 = vsyncadd [#allocation6], %s43
      %s46 = sshll.u32 [#allocation5], 4
      %s47 = int_to_ptr.vmem [resolvable:$true] %s46
      %49 = dma.hbm_to_vmem [thread:$0]  %s6, 16, %s47, [#allocation6]
    $region29: #{ppo_agent_forward.1} parent=1 // pred_fallthru
      _
    // Predicated region
    $region30: #{ppo_agent_forward.1} parent=1 // pred_check
      _
    $region31: #{ppo_agent_forward.1} parent=1 // pred_check_branch
      %51 = sbr.rel (0) target = $region33
    $region32: #{ppo_agent_forward.1} parent=1 // pred_region
      _
    $region33: #{ppo_agent_forward.1} parent=1 // pred_fallthru
      _
    // Predicated region
    $region34: #{ppo_agent_forward.1} parent=1 // pred_check
      _
    $region35: #{ppo_agent_forward.1} parent=1 // pred_check_branch
      %53 = sbr.rel (0) target = $region37
    $region36: #{ppo_agent_forward.1} parent=1 // pred_region
      _
    $region37: #{ppo_agent_forward.1} parent=1 // pred_fallthru
      _
    // Predicated region
    $region38: #{ppo_agent_forward.1} parent=1 // pred_check
      _
    $region39: #{ppo_agent_forward.1} parent=1 // pred_check_branch
      %55 = sbr.rel (0) target = $region41
    $region40: #{ppo_agent_forward.1} parent=1 // pred_region
      _
    $region41: #{ppo_agent_forward.1} parent=1 // pred_fallthru
      _
    // Predicated region
    $region42: #{ppo_agent_forward.1} parent=1 // pred_check
      _
    $region43: #{ppo_agent_forward.1} parent=1 // pred_check_branch
      %57 = sbr.rel (0) target = $region45
    $region44: #{ppo_agent_forward.1} parent=1 // pred_region
      _
    $region45: #{ppo_agent_forward.1} parent=1 // pred_fallthru
      _
    // Predicated region
    $region46: #{ppo_agent_forward.1} parent=1 // pred_check
      _
    $region47: #{ppo_agent_forward.1} parent=1 // pred_check_branch
      %59 = sbr.rel (0) target = $region49
    $region48: #{ppo_agent_forward.1} parent=1 // pred_region
      %60 = dma.done [#allocation4], 16
    $region49: #{ppo_agent_forward.1} parent=1 // pred_fallthru
      _
    // Predicated region
    $region50: #{ppo_agent_forward.1} parent=1 // pred_check
      _
    $region51: #{ppo_agent_forward.1} parent=1 // pred_check_branch
      %62 = sbr.rel (0) target = $region53
    $region52: #{ppo_agent_forward.1} parent=1 // pred_region
      %63 = dma.done [#allocation6], 16
    $region53: #{ppo_agent_forward.1} parent=1 // pred_fallthru
      _
    %v65 = vld [vmem:[%s0] sm:$0xff]
    %v66 = vpack.c.bf16 %v65, %v65
    %v67 = vld [vmem:[%s1] sm:$0xf]
    %v68 = vld [vmem:[%s1 + $0x4] sm:$0xf]
    %v69 = vld [vmem:[%s2] sm:$0x1]
    %v71 = vlaneseq
    %v72 = vshrl.u32 %v71, 7
    %v73 = vsub.s32 0, %v72
    %v74 = vrot.slane %v69, %v73
    %v78 = vunpack.c.l.b16 %v67
    %v79 = vunpack.c.l.b16 %v68
    %v80 = vpack.c.b16 %v79, %v78
    %vm82 = vcmask 130048
    %v84 = vsel %vm82, %v66, 0
    %86 = vmatprep.subr.bf16.mxu0 0
    %87 = vmatpush1.bf16.msra.mxu0 %v80
    %88 = vmatprep.subr.bf16.mxu0 0
    %89 = vmatpush1.bf16.msra.mxu0 0
    %90 = vmatprep.subr.bf16.mxu0 0
    %91 = vmatpush1.bf16.msra.mxu0 0
    %92 = vmatprep.subr.bf16.mxu0 0
    %93 = vmatpush1.bf16.msra.mxu0 0
    %94 = vmatprep.subr.bf16.mxu0 0
    %95 = vmatpush1.bf16.msra.mxu0 0
    %96 = vmatprep.subr.bf16.mxu0 0
    %97 = vmatpush1.bf16.msra.mxu0 0
    %98 = vmatprep.subr.bf16.mxu0 0
    %99 = vmatpush1.bf16.msra.mxu0 0
    %100 = vmatprep.subr.bf16.mxu0 0
    %101 = vmatpush1.bf16.msra.mxu0 0
    %102 = vmatprep.subr.bf16.mxu0 0
    %103 = vmatpush1.bf16.msra.mxu0 0
    %104 = vmatprep.subr.bf16.mxu0 0
    %105 = vmatpush1.bf16.msra.mxu0 0
    %106 = vmatprep.subr.bf16.mxu0 0
    %107 = vmatpush1.bf16.msra.mxu0 0
    %108 = vmatprep.subr.bf16.mxu0 0
    %109 = vmatpush1.bf16.msra.mxu0 0
    %110 = vmatprep.subr.bf16.mxu0 0
    %111 = vmatpush1.bf16.msra.mxu0 0
    %112 = vmatprep.subr.bf16.mxu0 0
    %113 = vmatpush1.bf16.msra.mxu0 0
    %114 = vmatprep.subr.bf16.mxu0 0
    %115 = vmatpush1.bf16.msra.mxu0 0
    %116 = vmatprep.subr.bf16.mxu0 0
    %117 = vmatpush1.bf16.msra.mxu0 0
    %118 = vmatprep.mubr.bf16.mxu0 0
    %119 = vmatmul.mubr.bf16.gmra.mrb[0].mxu0 %v84
    %v120 = vpop.f32.mrb[0].mxu0
    %v121 = vadd.f32 %v74, %v120
    %v122 = vpop.f32.mrb[0].mxu0
    %v123 = vpop.f32.mrb[0].mxu0
    %v124 = vpop.f32.mrb[0].mxu0
    %125 = vdwg.mxu0
    %v126 = vmax.f32 %v121, 0.0
    %v127 = vpack.c.bf16 %v126, %v126
    %v128 = vld [vmem:[%s3] sm:$0xf]
    %v129 = vld [vmem:[%s3 + $0x4] sm:$0xf]
    %v130 = vld [vmem:[%s3 + $0x8] sm:$0xf]
    %v131 = vld [vmem:[%s3 + $0xc] sm:$0xf]
    %v132 = vld [vmem:[#allocation3] sm:$0x1]
    %v134 = vlaneseq
    %v135 = vshrl.u32 %v134, 7
    %v136 = vsub.s32 0, %v135
    %v137 = vrot.slane %v132, %v136
    %v143 = vunpack.c.l.b16 %v128
    %v144 = vunpack.c.l.b16 %v129
    %v145 = vunpack.c.l.b16 %v130
    %v146 = vunpack.c.l.b16 %v131
    %v147 = vpack.c.b16 %v144, %v143
    %v148 = vpack.c.b16 %v146, %v145
    %vm151 = vcmask 261120
    %v153 = vsel %vm151, %v127, 0
    %155 = vmatprep.subr.bf16.mxu0 0
    %156 = vmatpush1.bf16.msra.mxu0 %v147
    %157 = vmatprep.subr.bf16.mxu0 0
    %158 = vmatpush1.bf16.msra.mxu0 %v148
    %159 = vmatprep.subr.bf16.mxu0 0
    %160 = vmatpush1.bf16.msra.mxu0 0
    %161 = vmatprep.subr.bf16.mxu0 0
    %162 = vmatpush1.bf16.msra.mxu0 0
    %163 = vmatprep.subr.bf16.mxu0 0
    %164 = vmatpush1.bf16.msra.mxu0 0
    %165 = vmatprep.subr.bf16.mxu0 0
    %166 = vmatpush1.bf16.msra.mxu0 0
    %167 = vmatprep.subr.bf16.mxu0 0
    %168 = vmatpush1.bf16.msra.mxu0 0
    %169 = vmatprep.subr.bf16.mxu0 0
    %170 = vmatpush1.bf16.msra.mxu0 0
    %171 = vmatprep.subr.bf16.mxu0 0
    %172 = vmatpush1.bf16.msra.mxu0 0
    %173 = vmatprep.subr.bf16.mxu0 0
    %174 = vmatpush1.bf16.msra.mxu0 0
    %175 = vmatprep.subr.bf16.mxu0 0
    %176 = vmatpush1.bf16.msra.mxu0 0
    %177 = vmatprep.subr.bf16.mxu0 0
    %178 = vmatpush1.bf16.msra.mxu0 0
    %179 = vmatprep.subr.bf16.mxu0 0
    %180 = vmatpush1.bf16.msra.mxu0 0
    %181 = vmatprep.subr.bf16.mxu0 0
    %182 = vmatpush1.bf16.msra.mxu0 0
    %183 = vmatprep.subr.bf16.mxu0 0
    %184 = vmatpush1.bf16.msra.mxu0 0
    %185 = vmatprep.subr.bf16.mxu0 0
    %186 = vmatpush1.bf16.msra.mxu0 0
    %187 = vmatprep.mubr.bf16.mxu0 0
    %188 = vmatmul.mubr.bf16.gmra.mrb[0].mxu0 %v153
    %v189 = vpop.f32.mrb[0].mxu0
    %v190 = vadd.f32 %v137, %v189
    %v191 = vpop.f32.mrb[0].mxu0
    %v192 = vpop.f32.mrb[0].mxu0
    %v193 = vpop.f32.mrb[0].mxu0
    %194 = vdwg.mxu0
    %v195 = vmax.f32 %v190, 0.0
    %v196 = vpack.c.bf16 %v195, %v195
    %v197 = vld [vmem:[%s5] sm:$0xf]
    %v198 = vld [vmem:[%s5 + $0x4] sm:$0xf]
    %v199 = vld [vmem:[%s5 + $0x8] sm:$0xf]
    %v200 = vld [vmem:[%s5 + $0xc] sm:$0xf]
    %v201 = vld [vmem:[#allocation5] sm:$0x1]
    %v203 = vlaneseq
    %v204 = vshrl.u32 %v203, 7
    %v205 = vsub.s32 0, %v204
    %v206 = vrot.slane %v201, %v205
    %v212 = vunpack.c.l.b16 %v197
    %v213 = vunpack.c.l.b16 %v198
    %v214 = vunpack.c.l.b16 %v199
    %v215 = vunpack.c.l.b16 %v200
    %v216 = vpack.c.b16 %v213, %v212
    %v217 = vpack.c.b16 %v215, %v214
    %v221 = vsel %vm151, %v196, 0
    %223 = vmatprep.subr.bf16.mxu0 0
    %224 = vmatpush1.bf16.msra.mxu0 %v216
    %225 = vmatprep.subr.bf16.mxu0 0
    %226 = vmatpush1.bf16.msra.mxu0 %v217
    %227 = vmatprep.subr.bf16.mxu0 0
    %228 = vmatpush1.bf16.msra.mxu0 0
    %229 = vmatprep.subr.bf16.mxu0 0
    %230 = vmatpush1.bf16.msra.mxu0 0
    %231 = vmatprep.subr.bf16.mxu0 0
    %232 = vmatpush1.bf16.msra.mxu0 0
    %233 = vmatprep.subr.bf16.mxu0 0
    %234 = vmatpush1.bf16.msra.mxu0 0
    %235 = vmatprep.subr.bf16.mxu0 0
    %236 = vmatpush1.bf16.msra.mxu0 0
    %237 = vmatprep.subr.bf16.mxu0 0
    %238 = vmatpush1.bf16.msra.mxu0 0
    %239 = vmatprep.subr.bf16.mxu0 0
    %240 = vmatpush1.bf16.msra.mxu0 0
    %241 = vmatprep.subr.bf16.mxu0 0
    %242 = vmatpush1.bf16.msra.mxu0 0
    %243 = vmatprep.subr.bf16.mxu0 0
    %244 = vmatpush1.bf16.msra.mxu0 0
    %245 = vmatprep.subr.bf16.mxu0 0
    %246 = vmatpush1.bf16.msra.mxu0 0
    %247 = vmatprep.subr.bf16.mxu0 0
    %248 = vmatpush1.bf16.msra.mxu0 0
    %249 = vmatprep.subr.bf16.mxu0 0
    %250 = vmatpush1.bf16.msra.mxu0 0
    %251 = vmatprep.subr.bf16.mxu0 0
    %252 = vmatpush1.bf16.msra.mxu0 0
    %253 = vmatprep.subr.bf16.mxu0 0
    %254 = vmatpush1.bf16.msra.mxu0 0
    %255 = vmatprep.mubr.bf16.mxu0 0
    %256 = vmatmul.mubr.bf16.gmra.mrb[0].mxu0 %v221
    %v257 = vpop.f32.mrb[0].mxu0
    %v258 = vadd.f32 %v206, %v257
    %v259 = vpop.f32.mrb[0].mxu0
    %v260 = vpop.f32.mrb[0].mxu0
    %v261 = vpop.f32.mrb[0].mxu0
    %262 = vdwg.mxu0
    %vm263 = vcmask 64512
    %v264 = vsel %vm263, %v258, -inf
    %265 = vmax.xlane.f32.xlu0 %v264
    %v266 = vpop.xlane.xlu0 %265
    %v267 = vsub.f32 %v258, %v266
    %v268 = vmul.f32 %v267, 1.442695
    %v269 = vpow.pop %v268
    %v270 = vsel %vm263, %v269, 0.0
    %271 = vadd.xlane.f32.xlu0 %v270
    %v272 = vpop.xlane.xlu0 %271
    %v273 = vrcp.pop %v272
    %v274 = vmul.f32 %v269, %v273
    %v275 = vld [vmem:[%s7] sm:$0xf]
    %v276 = vld [vmem:[%s7 + $0x4] sm:$0xf]
    %v277 = vld [vmem:[%s7 + $0x8] sm:$0xf]
    %v278 = vld [vmem:[%s7 + $0xc] sm:$0xf]
    %v279 = vld [vmem:[%s8] sm:$0x1]
    %v281 = vlaneseq
    %v282 = vshrl.u32 %v281, 7
    %v283 = vsub.s32 0, %v282
    %v284 = vrot.slane %v279, %v283
    %287 = vrot.lane.b32.xlu0 %v127, 96
    %v288 = vpop.permute.xlu0 %287
    %v293 = vunpack.c.l.b16 %v275
    %v294 = vunpack.c.l.b16 %v276
    %v295 = vunpack.c.l.b16 %v277
    %v296 = vunpack.c.l.b16 %v278
    %v297 = vpack.c.b16 %v294, %v293
    %v298 = vpack.c.b16 %v296, %v295
    %v302 = vsel %vm151, %v288, 0
    %304 = vmatprep.subr.bf16.mxu0 0
    %305 = vmatpush1.bf16.msra.mxu0 %v297
    %306 = vmatprep.subr.bf16.mxu0 0
    %307 = vmatpush1.bf16.msra.mxu0 %v298
    %308 = vmatprep.subr.bf16.mxu0 0
    %309 = vmatpush1.bf16.msra.mxu0 0
    %310 = vmatprep.subr.bf16.mxu0 0
    %311 = vmatpush1.bf16.msra.mxu0 0
    %312 = vmatprep.subr.bf16.mxu0 0
    %313 = vmatpush1.bf16.msra.mxu0 0
    %314 = vmatprep.subr.bf16.mxu0 0
    %315 = vmatpush1.bf16.msra.mxu0 0
    %316 = vmatprep.subr.bf16.mxu0 0
    %317 = vmatpush1.bf16.msra.mxu0 0
    %318 = vmatprep.subr.bf16.mxu0 0
    %319 = vmatpush1.bf16.msra.mxu0 0
    %320 = vmatprep.subr.bf16.mxu0 0
    %321 = vmatpush1.bf16.msra.mxu0 0
    %322 = vmatprep.subr.bf16.mxu0 0
    %323 = vmatpush1.bf16.msra.mxu0 0
    %324 = vmatprep.subr.bf16.mxu0 0
    %325 = vmatpush1.bf16.msra.mxu0 0
    %326 = vmatprep.subr.bf16.mxu0 0
    %327 = vmatpush1.bf16.msra.mxu0 0
    %328 = vmatprep.subr.bf16.mxu0 0
    %329 = vmatpush1.bf16.msra.mxu0 0
    %330 = vmatprep.subr.bf16.mxu0 0
    %331 = vmatpush1.bf16.msra.mxu0 0
    %332 = vmatprep.subr.bf16.mxu0 0
    %333 = vmatpush1.bf16.msra.mxu0 0
    %334 = vmatprep.subr.bf16.mxu0 0
    %335 = vmatpush1.bf16.msra.mxu0 0
    %336 = vmatprep.mubr.bf16.mxu0 0
    %337 = vmatmul.mubr.bf16.gmra.mrb[0].mxu0 %v302
    %v338 = vpop.f32.mrb[0].mxu0
    %v339 = vadd.f32 %v284, %v338
    %v340 = vpop.f32.mrb[0].mxu0
    %v341 = vpop.f32.mrb[0].mxu0
    %v342 = vpop.f32.mrb[0].mxu0
    %343 = vdwg.mxu0
    %v344 = vmax.f32 %v339, 0.0
    %v345 = vpack.c.bf16 %v344, %v344
    %v346 = vld [vmem:[%s9] sm:$0xf]
    %v347 = vld [vmem:[%s9 + $0x4] sm:$0xf]
    %v348 = vld [vmem:[%s9 + $0x8] sm:$0xf]
    %v349 = vld [vmem:[%s9 + $0xc] sm:$0xf]
    %v350 = vld [vmem:[#allocation2] sm:$0x1]
    %v352 = vlaneseq
    %v353 = vshrl.u32 %v352, 7
    %v354 = vsub.s32 0, %v353
    %v355 = vrot.slane %v350, %v354
    %v361 = vunpack.c.l.b16 %v346
    %v362 = vunpack.c.l.b16 %v347
    %v363 = vunpack.c.l.b16 %v348
    %v364 = vunpack.c.l.b16 %v349
    %v365 = vpack.c.b16 %v362, %v361
    %v366 = vpack.c.b16 %v364, %v363
    %v370 = vsel %vm151, %v345, 0
    %372 = vmatprep.subr.bf16.mxu0 0
    %373 = vmatpush1.bf16.msra.mxu0 %v365
    %374 = vmatprep.subr.bf16.mxu0 0
    %375 = vmatpush1.bf16.msra.mxu0 %v366
    %376 = vmatprep.subr.bf16.mxu0 0
    %377 = vmatpush1.bf16.msra.mxu0 0
    %378 = vmatprep.subr.bf16.mxu0 0
    %379 = vmatpush1.bf16.msra.mxu0 0
    %380 = vmatprep.subr.bf16.mxu0 0
    %381 = vmatpush1.bf16.msra.mxu0 0
    %382 = vmatprep.subr.bf16.mxu0 0
    %383 = vmatpush1.bf16.msra.mxu0 0
    %384 = vmatprep.subr.bf16.mxu0 0
    %385 = vmatpush1.bf16.msra.mxu0 0
    %386 = vmatprep.subr.bf16.mxu0 0
    %387 = vmatpush1.bf16.msra.mxu0 0
    %388 = vmatprep.subr.bf16.mxu0 0
    %389 = vmatpush1.bf16.msra.mxu0 0
    %390 = vmatprep.subr.bf16.mxu0 0
    %391 = vmatpush1.bf16.msra.mxu0 0
    %392 = vmatprep.subr.bf16.mxu0 0
    %393 = vmatpush1.bf16.msra.mxu0 0
    %394 = vmatprep.subr.bf16.mxu0 0
    %395 = vmatpush1.bf16.msra.mxu0 0
    %396 = vmatprep.subr.bf16.mxu0 0
    %397 = vmatpush1.bf16.msra.mxu0 0
    %398 = vmatprep.subr.bf16.mxu0 0
    %399 = vmatpush1.bf16.msra.mxu0 0
    %400 = vmatprep.subr.bf16.mxu0 0
    %401 = vmatpush1.bf16.msra.mxu0 0
    %402 = vmatprep.subr.bf16.mxu0 0
    %403 = vmatpush1.bf16.msra.mxu0 0
    %404 = vmatprep.mubr.bf16.mxu0 0
    %405 = vmatmul.mubr.bf16.gmra.mrb[0].mxu0 %v370
    %v406 = vpop.f32.mrb[0].mxu0
    %v407 = vadd.f32 %v355, %v406
    %v408 = vpop.f32.mrb[0].mxu0
    %v409 = vpop.f32.mrb[0].mxu0
    %v410 = vpop.f32.mrb[0].mxu0
    %411 = vdwg.mxu0
    %413 = vrot.lane.b32.xlu0 %v407, 8
    %v414 = vpop.permute.xlu0 %413
    %v416 = vsel %vm263, %v274, %v414
    %vm417 = vcmask 72704
    %418 = vst.msk [vmem:[%s11] sm:$0xff] %vm417, %v416
    // Predicated region
    $region54: #{ppo_agent_forward.1} parent=1 // pred_check
      _
    $region55: #{ppo_agent_forward.1} parent=1 // pred_check_branch
      %420 = sbr.rel (0) target = $region57
    $region56: #{ppo_agent_forward.1} parent=1 // pred_region
      _
    $region57: #{ppo_agent_forward.1} parent=1 // pred_fallthru
      _
    // Predicated region
    $region58: #{ppo_agent_forward.1} parent=1 // pred_check
      _
    $region59: #{ppo_agent_forward.1} parent=1 // pred_check_branch
      %422 = sbr.rel (0) target = $region61
    $region60: #{ppo_agent_forward.1} parent=1 // pred_region
      _
    $region61: #{ppo_agent_forward.1} parent=1 // pred_fallthru
      _
    %423 = vsyncpa [#allocation4], 1
    %424 = vsyncpa [#allocation6], 1

</llo_original>
